<compile_context>
chip_gen: v7x
topology: tpu7x:2x2x1
jax: 0.10.0
libtpu: 0.0.40
codegen_flags: <defaults>
</compile_context>

<pallas_src>
import functools

import jax
import jax.numpy as jnp
from jax import lax
from jax.experimental import pallas as pl
from jax.experimental.pallas import tpu as pltpu

N_SIDES = 4
LN_EPS = 1e-5


def _round_up(x, m):
    return (x + m - 1) // m * m


def _mp_inter_kernel(x_ref, w_ref, aux_ref, o_ref, *, shift, n_sides):
    x = x_ref[...]

    # In-tile roll over the sides axis. Rows come in contiguous groups of
    # n_sides and tile_m % n_sides == 0, so for row r = g*n + s the rolled
    # source row is g*n + (s - shift) % n, i.e. r - sh when s >= sh and
    # r - sh + n when s < sh (sh = shift % n). Two whole-tile sublane rolls
    # plus a per-row select implement this with no extra HBM traffic.
    sh = shift % n_sides
    if sh == 0:
        xr = x
    else:
        near = jnp.roll(x, sh, axis=0)            # reads row r - sh
        far = jnp.roll(x, sh - n_sides, axis=0)   # reads row r - sh + n_sides
        side = lax.broadcasted_iota(jnp.int32, x.shape, 0) % n_sides
        xr = jnp.where(side < sh, far, near)

    # Single fused MXU pass: x@Ws^T + x_rolled@Wo^T == [x | x_rolled] @ W_cat.
    x_cat = jnp.concatenate([x, xr], axis=-1)
    h = jnp.dot(x_cat, w_ref[...], preferred_element_type=jnp.float32)
    h = jnp.maximum(h + aux_ref[0:1, :], 0.0)     # combined bias + ReLU

    # LayerNorm over the embedding dim (biased variance, one pass, eps=1e-5).
    inv_d = 1.0 / h.shape[-1]
    mean = jnp.sum(h, axis=-1, keepdims=True) * inv_d
    mean_sq = jnp.sum(h * h, axis=-1, keepdims=True) * inv_d
    var = jnp.maximum(mean_sq - mean * mean, 0.0)
    normed = (h - mean) * lax.rsqrt(var + LN_EPS)
    o_ref[...] = (normed * aux_ref[1:2, :] + aux_ref[2:3, :]).astype(o_ref.dtype)


@functools.partial(jax.jit, static_argnames=("shift", "tile_m"))
def message_passing_inter(tokens, params, shift, tile_m=512):
    """tokens: [B, H, W, N_SIDES, D] float32. shift: +1 or -1 (any int works)."""
    B, H, W, S, D = tokens.shape
    assert S == N_SIDES
    M = B * H * W * S

    x = tokens.reshape(M, D)

    # nn.Linear stores W as (out, in); kernel uses x @ W^T. Fuse the two
    # projections into one (2D, D) weight and one combined bias.
    w_cat = jnp.concatenate([params["w_self"].T, params["w_other"].T], axis=0)
    aux = jnp.stack(
        [params["b_self"] + params["b_other"],
         params["ln_gamma"],
         params["ln_beta"]], axis=0)                       # (3, D)

    # Tile sizing: multiple of 8 sublanes (hence of N_SIDES), capped by M and
    # by a ~24 MiB budget for the double-buffered x/out streams (v7x-safe).
    tm = min(tile_m, _round_up(M, 8))
    while tm > 8 and 16 * D * tm > 24 * 1024 * 1024:
        tm //= 2
    tm = max(8, _round_up(tm, 8))

    # Tail padding instead of asserting M % tile_m == 0. Padded rows are whole
    # zero groups (M is always a multiple of N_SIDES) so the in-tile roll never
    # mixes real and padded rows; padded outputs are sliced off below.
    M_pad = _round_up(M, tm)
    if M_pad != M:
        x = jnp.pad(x, ((0, M_pad - M), (0, 0)))

    grid = (M_pad // tm,)
    kernel = functools.partial(_mp_inter_kernel, shift=shift, n_sides=N_SIDES)

    out = pl.pallas_call(
        kernel,
        out_shape=jax.ShapeDtypeStruct((M_pad, D), tokens.dtype),
        grid_spec=pltpu.PrefetchScalarGridSpec(
            num_scalar_prefetch=0,
            grid=grid,
            in_specs=[
                pl.BlockSpec((tm, D), lambda i: (i, 0)),      # token rows
                pl.BlockSpec((2 * D, D), lambda i: (0, 0)),   # fused weights
                pl.BlockSpec((3, D), lambda i: (0, 0)),       # bias/gamma/beta
            ],
            out_specs=pl.BlockSpec((tm, D), lambda i: (i, 0)),
        ),
        compiler_params=pltpu.CompilerParams(
            dimension_semantics=("parallel",),
            vmem_limit_bytes=48 * 1024 * 1024,
        ),
    )(x, w_cat, aux)

    if M_pad != M:
        out = out[:M]
    return out.reshape(B, H, W, S, D)


def init_params(key, embedding_dim):
    assert embedding_dim % N_SIDES == 0
    k1, k2, k3, k4 = jax.random.split(key, 4)
    scale = 1.0 / jnp.sqrt(embedding_dim)
    return {
        "w_self": jax.random.uniform(k1, (embedding_dim, embedding_dim),
                                     jnp.float32, -scale, scale),
        "b_self": jax.random.uniform(k2, (embedding_dim,),
                                     jnp.float32, -scale, scale),
        "w_other": jax.random.uniform(k3, (embedding_dim, embedding_dim),
                                      jnp.float32, -scale, scale),
        "b_other": jax.random.uniform(k4, (embedding_dim,),
                                      jnp.float32, -scale, scale),
        "ln_gamma": jnp.ones((embedding_dim,), jnp.float32),
        "ln_beta": jnp.zeros((embedding_dim,), jnp.float32),
    }


def _reference(tokens, params, shift):
    # Pure-JAX reference mirroring the PyTorch forward exactly.
    hp = jax.lax.Precision.HIGHEST
    self_tok = jnp.matmul(tokens, params["w_self"].T, precision=hp) + params["b_self"]
    other_tok = jnp.matmul(tokens, params["w_other"].T, precision=hp) + params["b_other"]
    other_tok = jnp.roll(other_tok, shift, axis=3)
    h = jnp.maximum(self_tok + other_tok, 0.0)
    mean = jnp.mean(h, axis=-1, keepdims=True)
    var = jnp.mean((h - mean) ** 2, axis=-1, keepdims=True)
    normed = (h - mean) / jnp.sqrt(var + LN_EPS)
    return normed * params["ln_gamma"] + params["ln_beta"]


if __name__ == "__main__":
    key = jax.random.PRNGKey(0)
    k_tok, k_param, k_tok2 = jax.random.split(key, 3)

    B, H, W, D = 2, 4, 4, 32          # M = 2*4*4*4 = 128 rows
    tokens = jax.random.normal(k_tok, (B, H, W, N_SIDES, D), jnp.float32)
    params = init_params(k_param, D)

    for shift in (1, -1):
        out = jax.block_until_ready(
            message_passing_inter(tokens, params, shift=shift))
        ref = _reference(tokens, params, shift)
        assert out.shape == tokens.shape
        assert jnp.allclose(out, ref, atol=1e-3, rtol=1e-3), f"mismatch shift={shift}"

    # Multi-tile + tail-padding path: M = 2*6*5*4 = 240, tile_m=64 -> pad to 256.
    tokens2 = jax.random.normal(k_tok2, (2, 6, 5, N_SIDES, D), jnp.float32)
    out2 = jax.block_until_ready(
        message_passing_inter(tokens2, params, shift=1, tile_m=64))
    ref2 = _reference(tokens2, params, 1)
    assert out2.shape == tokens2.shape
    assert jnp.allclose(out2, ref2, atol=1e-3, rtol=1e-3), "mismatch multi-tile"

    print("KERNEL_OK")
</pallas_src>

<mosaic_0001>
module attributes {stable_mosaic.version = 11 : i64} {
  func.func @_mp_inter_kernel(%arg0: i32, %arg1: memref<128x32xf32, #tpu.memory_space<vmem>>, %arg2: memref<64x32xf32, #tpu.memory_space<vmem>>, %arg3: memref<3x32xf32, #tpu.memory_space<vmem>>, %arg4: memref<128x32xf32, #tpu.memory_space<vmem>>) attributes {dimension_semantics = [#tpu.dimension_semantics<parallel>], iteration_bounds = array<i64: 1>, scalar_prefetch = 0 : i64, scratch_operands = 0 : i64, tpu.core_type = #tpu.core_type<tc>, window_params = [{transform_indices = @transform_0, window_bounds = array<i64: 128, 32>}, {pipeline_mode = #tpu.pipeline_mode<synchronous>, transform_indices = @transform_1, window_bounds = array<i64: 64, 32>}, {pipeline_mode = #tpu.pipeline_mode<synchronous>, transform_indices = @transform_2, window_bounds = array<i64: 3, 32>}, {transform_indices = @transform_3, window_bounds = array<i64: 128, 32>}]} {
    %c0 = arith.constant 0 : index
    %c0_0 = arith.constant 0 : index
    %0 = vector.load %arg1[%c0, %c0_0] : memref<128x32xf32, #tpu.memory_space<vmem>>, vector<128x32xf32>
    %1 = vector.extract_strided_slice %0 {offsets = [127, 0], sizes = [1, 32], strides = [1, 1]} : vector<128x32xf32> to vector<1x32xf32>
    %2 = vector.extract_strided_slice %0 {offsets = [0, 0], sizes = [127, 32], strides = [1, 1]} : vector<128x32xf32> to vector<127x32xf32>
    %3 = tpu.concatenate %1, %2 in 0 : vector<1x32xf32>, vector<127x32xf32> -> vector<128x32xf32>
    %4 = vector.extract_strided_slice %0 {offsets = [3, 0], sizes = [125, 32], strides = [1, 1]} : vector<128x32xf32> to vector<125x32xf32>
    %5 = vector.extract_strided_slice %0 {offsets = [0, 0], sizes = [3, 32], strides = [1, 1]} : vector<128x32xf32> to vector<3x32xf32>
    %6 = tpu.concatenate %4, %5 in 0 : vector<125x32xf32>, vector<3x32xf32> -> vector<128x32xf32>
    %7 = tpu.iota {dimensions = array<i32: 0>} : vector<128x32xi32>
    %c4_i32 = arith.constant 4 : i32
    %c0_i32 = arith.constant 0 : i32
    %8 = arith.cmpi eq, %c4_i32, %c0_i32 : i32
    %c1_i32 = arith.constant 1 : i32
    %9 = arith.select %8, %c1_i32, %c4_i32 : i32
    %10 = vector.broadcast %9 : i32 to vector<128x32xi32>
    %11 = arith.remsi %7, %10 : vector<128x32xi32>
    %c0_i32_1 = arith.constant 0 : i32
    %12 = vector.broadcast %c0_i32_1 : i32 to vector<128x32xi32>
    %13 = arith.cmpi ne, %11, %12 : vector<128x32xi32>
    %c0_i32_2 = arith.constant 0 : i32
    %14 = vector.broadcast %c0_i32_2 : i32 to vector<128x32xi32>
    %15 = arith.cmpi slt, %11, %14 : vector<128x32xi32>
    %c0_i32_3 = arith.constant 0 : i32
    %16 = arith.cmpi slt, %9, %c0_i32_3 : i32
    %17 = vector.broadcast %16 : i1 to vector<128x32xi1>
    %18 = vector.broadcast %17 : vector<128x32xi1> to vector<128x32xi1>
    %19 = arith.xori %15, %18 : vector<128x32xi1>
    %20 = arith.andi %19, %13 : vector<128x32xi1>
    %21 = vector.broadcast %9 : i32 to vector<128x32xi32>
    %22 = arith.addi %11, %21 : vector<128x32xi32>
    %23 = arith.select %20, %22, %11 : vector<128x32xi1>, vector<128x32xi32>
    %c1_i32_4 = arith.constant 1 : i32
    %24 = vector.broadcast %c1_i32_4 : i32 to vector<128x32xi32>
    %25 = arith.cmpi slt, %23, %24 : vector<128x32xi32>
    %26 = arith.select %25, %6, %3 : vector<128x32xi1>, vector<128x32xf32>
    %27 = tpu.concatenate %0, %26 in 1 : vector<128x32xf32>, vector<128x32xf32> -> vector<128x64xf32>
    %c0_5 = arith.constant 0 : index
    %c0_6 = arith.constant 0 : index
    %28 = vector.load %arg2[%c0_5, %c0_6] : memref<64x32xf32, #tpu.memory_space<vmem>>, vector<64x32xf32>
    %cst = arith.constant dense<0.000000e+00> : vector<128x32xf32>
    %29 = tpu.matmul %27, %28, %cst {dimension_numbers = #tpu.dot_dimension_numbers<[1], [0], [0], [1], [0, 0, 1, 1], [], []>} : vector<128x64xf32>, vector<64x32xf32>, vector<128x32xf32> -> vector<128x32xf32>
    %c0_7 = arith.constant 0 : index
    %c0_8 = arith.constant 0 : index
    %30 = vector.load %arg3[%c0_7, %c0_8] : memref<3x32xf32, #tpu.memory_space<vmem>>, vector<1x32xf32>
    %31 = vector.broadcast %30 : vector<1x32xf32> to vector<128x32xf32>
    %32 = arith.addf %29, %31 : vector<128x32xf32>
    %cst_9 = arith.constant 0.000000e+00 : f32
    %33 = vector.broadcast %cst_9 : f32 to vector<128x32xf32>
    %34 = arith.maximumf %32, %33 : vector<128x32xf32>
    %cst_10 = arith.constant dense<0.000000e+00> : vector<128xf32>
    %35 = vector.multi_reduction <add>, %34, %cst_10 [1] : vector<128x32xf32> to vector<128xf32>
    %36 = vector.shape_cast %35 : vector<128xf32> to vector<128x1xf32>
    %cst_11 = arith.constant 3.125000e-02 : f32
    %37 = vector.broadcast %cst_11 : f32 to vector<128x1xf32>
    %38 = arith.mulf %36, %37 : vector<128x1xf32>
    %39 = arith.mulf %34, %34 : vector<128x32xf32>
    %cst_12 = arith.constant dense<0.000000e+00> : vector<128xf32>
    %40 = vector.multi_reduction <add>, %39, %cst_12 [1] : vector<128x32xf32> to vector<128xf32>
    %41 = vector.shape_cast %40 : vector<128xf32> to vector<128x1xf32>
    %cst_13 = arith.constant 3.125000e-02 : f32
    %42 = vector.broadcast %cst_13 : f32 to vector<128x1xf32>
    %43 = arith.mulf %41, %42 : vector<128x1xf32>
    %44 = arith.mulf %38, %38 : vector<128x1xf32>
    %45 = arith.subf %43, %44 : vector<128x1xf32>
    %cst_14 = arith.constant 0.000000e+00 : f32
    %46 = vector.broadcast %cst_14 : f32 to vector<128x1xf32>
    %47 = arith.maximumf %45, %46 : vector<128x1xf32>
    %48 = vector.broadcast %38 : vector<128x1xf32> to vector<128x32xf32>
    %49 = arith.subf %34, %48 : vector<128x32xf32>
    %cst_15 = arith.constant 9.99999974E-6 : f32
    %50 = vector.broadcast %cst_15 : f32 to vector<128x1xf32>
    %51 = arith.addf %47, %50 : vector<128x1xf32>
    %52 = math.rsqrt %51 : vector<128x1xf32>
    %53 = vector.broadcast %52 : vector<128x1xf32> to vector<128x32xf32>
    %54 = arith.mulf %49, %53 : vector<128x32xf32>
    %c1 = arith.constant 1 : index
    %c0_16 = arith.constant 0 : index
    %55 = vector.load %arg3[%c1, %c0_16] : memref<3x32xf32, #tpu.memory_space<vmem>>, vector<1x32xf32>
    %56 = vector.broadcast %55 : vector<1x32xf32> to vector<128x32xf32>
    %57 = arith.mulf %54, %56 : vector<128x32xf32>
    %c2 = arith.constant 2 : index
    %c0_17 = arith.constant 0 : index
    %58 = vector.load %arg3[%c2, %c0_17] : memref<3x32xf32, #tpu.memory_space<vmem>>, vector<1x32xf32>
    %59 = vector.broadcast %58 : vector<1x32xf32> to vector<128x32xf32>
    %60 = arith.addf %57, %59 : vector<128x32xf32>
    %c0_18 = arith.constant 0 : index
    %c0_19 = arith.constant 0 : index
    %61 = vector.load %arg4[%c0_18, %c0_19] : memref<128x32xf32, #tpu.memory_space<vmem>>, vector<128x32xf32>
    tpu.vector_store %arg4[%c0_18, %c0_19], %60 {strides = array<i32>} : memref<128x32xf32, #tpu.memory_space<vmem>>, vector<128x32xf32>,
    return
  }
  func.func @transform_0(%arg0: i32) -> (i32, i32) {
    %c0_i32 = arith.constant 0 : i32
    %c0_i32_0 = arith.constant 0 : i32
    return %arg0, %c0_i32 : i32, i32
  }
  func.func @transform_1(%arg0: i32) -> (i32, i32) {
    %c0_i32 = arith.constant 0 : i32
    %c0_i32_0 = arith.constant 0 : i32
    %c0_i32_1 = arith.constant 0 : i32
    return %c0_i32, %c0_i32_0 : i32, i32
  }
  func.func @transform_2(%arg0: i32) -> (i32, i32) {
    %c0_i32 = arith.constant 0 : i32
    %c0_i32_0 = arith.constant 0 : i32
    %c0_i32_1 = arith.constant 0 : i32
    return %c0_i32, %c0_i32_0 : i32, i32
  }
  func.func @transform_3(%arg0: i32) -> (i32, i32) {
    %c0_i32 = arith.constant 0 : i32
    %c0_i32_0 = arith.constant 0 : i32
    return %arg0, %c0_i32 : i32, i32
  }
}

</mosaic_0001>

<llo_original>
// kernel: message_passing_inter.1
$region0: #{message_passing_inter.1}
  #allocation0 [shape = 'u32[]', space=smem, size = 0x4, offset = 0x4, fixed_abs, tag = 'smem constant byte address 0x4 - core index']
  #allocation1 [shape = 'u32[144,128]{1,0:T(1,128)}', space=vmem, size = 0x12000, scoped, tag = 'internal scratch']
  %s0 = inlined_call_operand.vmem [shape: f32[128,32], index: 0, kind: input, shape index: {}]
  %s1 = inlined_call_operand.vmem [shape: f32[64,32], index: 1, kind: input, shape index: {}]
  %s2 = inlined_call_operand.vmem [shape: f32[3,32], index: 2, kind: input, shape index: {}]
  %s3 = inlined_call_operand.hbm [shape: f32[128,32], index: 3, kind: output, shape index: {}]
  %s4 = sld [smem:[#allocation0]]
  $region22: #{message_passing_inter.1} parent=0
    _
  %s6 = ssub.s32 1, %s4
  %s7 = scalar_select 0, %s6, %s4
  $region1: #{message_passing_inter.1} parent=0
    #allocation2 [shape = 'u8[65536]{0}', space=vmem, size = 0x10000, scoped, tag = 'output window, operand 0, single buffered']
    #allocation3 [shape = 's32[1]{0}', space=sflag, size = 0x4, scoped, tag = 'scoped memory for message_passing_inter.1']
    %8 = vsyncpa [#allocation3], 0
    // Predicated region
    $region2: #{message_passing_inter.1} parent=1 // pred_check
      _
    $region3: #{message_passing_inter.1} parent=1 // pred_check_branch
      %10 = sbr.rel (0) target = $region5
    $region4: #{message_passing_inter.1} parent=1 // pred_region
      _
    $region5: #{message_passing_inter.1} parent=1 // pred_fallthru
      _
    // Predicated region
    $region6: #{message_passing_inter.1} parent=1 // pred_check
      _
    $region7: #{message_passing_inter.1} parent=1 // pred_check_branch
      %12 = sbr.rel (0) target = $region9
    $region8: #{message_passing_inter.1} parent=1 // pred_region
      _
    $region9: #{message_passing_inter.1} parent=1 // pred_fallthru
      _
    // Predicated region
    $region10: #{message_passing_inter.1} parent=1 // pred_check
      _
    $region11: #{message_passing_inter.1} parent=1 // pred_check_branch
      %14 = sbr.rel (0) target = $region13
    $region12: #{message_passing_inter.1} parent=1 // pred_region
      _
    $region13: #{message_passing_inter.1} parent=1 // pred_fallthru
      _
    %v15 = vld [vmem:[%s0] sm:$0xff]
    %v16 = vld [vmem:[%s0 + $0x8] sm:$0xff]
    %v17 = vld [vmem:[%s0 + $0x10] sm:$0xff]
    %v18 = vld [vmem:[%s0 + $0x18] sm:$0xff]
    %v19 = vld [vmem:[%s0 + $0x20] sm:$0xff]
    %v20 = vld [vmem:[%s0 + $0x28] sm:$0xff]
    %v21 = vld [vmem:[%s0 + $0x30] sm:$0xff]
    %v22 = vld [vmem:[%s0 + $0x38] sm:$0xff]
    %v23 = vld [vmem:[%s0 + $0x40] sm:$0xff]
    %v24 = vld [vmem:[%s0 + $0x48] sm:$0xff]
    %v25 = vld [vmem:[%s0 + $0x50] sm:$0xff]
    %v26 = vld [vmem:[%s0 + $0x58] sm:$0xff]
    %v27 = vld [vmem:[%s0 + $0x60] sm:$0xff]
    %v28 = vld [vmem:[%s0 + $0x68] sm:$0xff]
    %v29 = vld [vmem:[%s0 + $0x70] sm:$0xff]
    %v30 = vld [vmem:[%s0 + $0x78] sm:$0xff]
    %v32 = vrot.slane %v30, 7
    %vm49 = vcmask 1040384
    %v50 = vrot.slane %v15, 7
    %v51 = vrot.slane %v16, 7
    %v52 = vsel %vm49, %v50, %v51
    %v53 = vrot.slane %v17, 7
    %v54 = vsel %vm49, %v51, %v53
    %v55 = vrot.slane %v18, 7
    %v56 = vsel %vm49, %v53, %v55
    %v57 = vrot.slane %v19, 7
    %v58 = vsel %vm49, %v55, %v57
    %v59 = vrot.slane %v20, 7
    %v60 = vsel %vm49, %v57, %v59
    %v61 = vrot.slane %v21, 7
    %v62 = vsel %vm49, %v59, %v61
    %v63 = vrot.slane %v22, 7
    %v64 = vsel %vm49, %v61, %v63
    %v65 = vrot.slane %v23, 7
    %v66 = vsel %vm49, %v63, %v65
    %v67 = vrot.slane %v24, 7
    %v68 = vsel %vm49, %v65, %v67
    %v69 = vrot.slane %v25, 7
    %v70 = vsel %vm49, %v67, %v69
    %v71 = vrot.slane %v26, 7
    %v72 = vsel %vm49, %v69, %v71
    %v73 = vrot.slane %v27, 7
    %v74 = vsel %vm49, %v71, %v73
    %v75 = vrot.slane %v28, 7
    %v76 = vsel %vm49, %v73, %v75
    %v77 = vrot.slane %v29, 7
    %v78 = vsel %vm49, %v75, %v77
    %v79 = vsel %vm49, %v77, %v32
    %v96 = vsel %vm49, %v32, %v50
    %vm97 = vcmask 1044480
    %v98 = vrot.slane %v15, 3
    %v99 = vrot.slane %v16, 3
    %v100 = vsel %vm97, %v98, %v99
    %v101 = vrot.slane %v17, 3
    %v102 = vsel %vm97, %v99, %v101
    %v103 = vrot.slane %v18, 3
    %v104 = vsel %vm97, %v101, %v103
    %v105 = vrot.slane %v19, 3
    %v106 = vsel %vm97, %v103, %v105
    %v107 = vrot.slane %v20, 3
    %v108 = vsel %vm97, %v105, %v107
    %v109 = vrot.slane %v21, 3
    %v110 = vsel %vm97, %v107, %v109
    %v111 = vrot.slane %v22, 3
    %v112 = vsel %vm97, %v109, %v111
    %v113 = vrot.slane %v23, 3
    %v114 = vsel %vm97, %v111, %v113
    %v115 = vrot.slane %v24, 3
    %v116 = vsel %vm97, %v113, %v115
    %v117 = vrot.slane %v25, 3
    %v118 = vsel %vm97, %v115, %v117
    %v119 = vrot.slane %v26, 3
    %v120 = vsel %vm97, %v117, %v119
    %v121 = vrot.slane %v27, 3
    %v122 = vsel %vm97, %v119, %v121
    %v123 = vrot.slane %v28, 3
    %v124 = vsel %vm97, %v121, %v123
    %v125 = vrot.slane %v29, 3
    %v126 = vsel %vm97, %v123, %v125
    %v127 = vrot.slane %v30, 3
    %v128 = vsel %vm97, %v125, %v127
    %v146 = vsel %vm97, %v127, %v98
    %v147 = vlaneseq
    %v148 = vshrl.u32 %v147, 7
    %v149 = vadd.s32 %v148, 8
    %v150 = vadd.s32 %v148, 16
    %v151 = vadd.s32 %v148, 24
    %v152 = vadd.s32 %v148, 32
    %v153 = vadd.s32 %v148, 40
    %v154 = vadd.s32 %v148, 48
    %v155 = vadd.s32 %v148, 56
    %v156 = vadd.s32 %v148, 64
    %v157 = vadd.s32 %v148, 72
    %v158 = vadd.s32 %v148, 80
    %v159 = vadd.s32 %v148, 88
    %v160 = vadd.s32 %v148, 96
    %v161 = vadd.s32 %v148, 104
    %v162 = vadd.s32 %v148, 112
    %v163 = vadd.s32 %v148, 120
    %vm164 = vcmp.lt.s32.totalorder %v148, 0
    %v165 = vsub.s32 0, %v148
    %v166 = vsel %vm164, %v165, %v148
    %v167 = vshrl.u32 %v166, 2
    %v168 = vand.u32 %v166, 3
    %v169 = vsub.s32 0, %v168
    %v170 = vsel %vm164, %v169, %v168
    %vm171 = vcmp.lt.s32.totalorder %v149, 0
    %v172 = vsub.s32 0, %v149
    %v173 = vsel %vm171, %v172, %v149
    %v174 = vshrl.u32 %v173, 2
    %v175 = vand.u32 %v173, 3
    %v176 = vsub.s32 0, %v175
    %v177 = vsel %vm171, %v176, %v175
    %vm178 = vcmp.lt.s32.totalorder %v150, 0
    %v179 = vsub.s32 0, %v150
    %v180 = vsel %vm178, %v179, %v150
    %v181 = vshrl.u32 %v180, 2
    %v182 = vand.u32 %v180, 3
    %v183 = vsub.s32 0, %v182
    %v184 = vsel %vm178, %v183, %v182
    %vm185 = vcmp.lt.s32.totalorder %v151, 0
    %v186 = vsub.s32 0, %v151
    %v187 = vsel %vm185, %v186, %v151
    %v188 = vshrl.u32 %v187, 2
    %v189 = vand.u32 %v187, 3
    %v190 = vsub.s32 0, %v189
    %v191 = vsel %vm185, %v190, %v189
    %vm192 = vcmp.lt.s32.totalorder %v152, 0
    %v193 = vsub.s32 0, %v152
    %v194 = vsel %vm192, %v193, %v152
    %v195 = vshrl.u32 %v194, 2
    %v196 = vand.u32 %v194, 3
    %v197 = vsub.s32 0, %v196
    %v198 = vsel %vm192, %v197, %v196
    %vm199 = vcmp.lt.s32.totalorder %v153, 0
    %v200 = vsub.s32 0, %v153
    %v201 = vsel %vm199, %v200, %v153
    %v202 = vshrl.u32 %v201, 2
    %v203 = vand.u32 %v201, 3
    %v204 = vsub.s32 0, %v203
    %v205 = vsel %vm199, %v204, %v203
    %vm206 = vcmp.lt.s32.totalorder %v154, 0
    %v207 = vsub.s32 0, %v154
    %v208 = vsel %vm206, %v207, %v154
    %v209 = vshrl.u32 %v208, 2
    %v210 = vand.u32 %v208, 3
    %v211 = vsub.s32 0, %v210
    %v212 = vsel %vm206, %v211, %v210
    %vm213 = vcmp.lt.s32.totalorder %v155, 0
    %v214 = vsub.s32 0, %v155
    %v215 = vsel %vm213, %v214, %v155
    %v216 = vshrl.u32 %v215, 2
    %v217 = vand.u32 %v215, 3
    %v218 = vsub.s32 0, %v217
    %v219 = vsel %vm213, %v218, %v217
    %vm220 = vcmp.lt.s32.totalorder %v156, 0
    %v221 = vsub.s32 0, %v156
    %v222 = vsel %vm220, %v221, %v156
    %v223 = vshrl.u32 %v222, 2
    %v224 = vand.u32 %v222, 3
    %v225 = vsub.s32 0, %v224
    %v226 = vsel %vm220, %v225, %v224
    %vm227 = vcmp.lt.s32.totalorder %v157, 0
    %v228 = vsub.s32 0, %v157
    %v229 = vsel %vm227, %v228, %v157
    %v230 = vshrl.u32 %v229, 2
    %v231 = vand.u32 %v229, 3
    %v232 = vsub.s32 0, %v231
    %v233 = vsel %vm227, %v232, %v231
    %vm234 = vcmp.lt.s32.totalorder %v158, 0
    %v235 = vsub.s32 0, %v158
    %v236 = vsel %vm234, %v235, %v158
    %v237 = vshrl.u32 %v236, 2
    %v238 = vand.u32 %v236, 3
    %v239 = vsub.s32 0, %v238
    %v240 = vsel %vm234, %v239, %v238
    %vm241 = vcmp.lt.s32.totalorder %v159, 0
    %v242 = vsub.s32 0, %v159
    %v243 = vsel %vm241, %v242, %v159
    %v244 = vshrl.u32 %v243, 2
    %v245 = vand.u32 %v243, 3
    %v246 = vsub.s32 0, %v245
    %v247 = vsel %vm241, %v246, %v245
    %vm248 = vcmp.lt.s32.totalorder %v160, 0
    %v249 = vsub.s32 0, %v160
    %v250 = vsel %vm248, %v249, %v160
    %v251 = vshrl.u32 %v250, 2
    %v252 = vand.u32 %v250, 3
    %v253 = vsub.s32 0, %v252
    %v254 = vsel %vm248, %v253, %v252
    %vm255 = vcmp.lt.s32.totalorder %v161, 0
    %v256 = vsub.s32 0, %v161
    %v257 = vsel %vm255, %v256, %v161
    %v258 = vshrl.u32 %v257, 2
    %v259 = vand.u32 %v257, 3
    %v260 = vsub.s32 0, %v259
    %v261 = vsel %vm255, %v260, %v259
    %vm262 = vcmp.lt.s32.totalorder %v162, 0
    %v263 = vsub.s32 0, %v162
    %v264 = vsel %vm262, %v263, %v162
    %v265 = vshrl.u32 %v264, 2
    %v266 = vand.u32 %v264, 3
    %v267 = vsub.s32 0, %v266
    %v268 = vsel %vm262, %v267, %v266
    %vm269 = vcmp.lt.s32.totalorder %v163, 0
    %v270 = vsub.s32 0, %v163
    %v271 = vsel %vm269, %v270, %v163
    %v272 = vshrl.u32 %v271, 2
    %v273 = vand.u32 %v271, 3
    %v274 = vsub.s32 0, %v273
    %v275 = vsel %vm269, %v274, %v273
    %vm276 = vcmp.ne.s32.totalorder %v170, 0
    %vm277 = vcmp.ne.s32.totalorder %v177, 0
    %vm278 = vcmp.ne.s32.totalorder %v184, 0
    %vm279 = vcmp.ne.s32.totalorder %v191, 0
    %vm280 = vcmp.ne.s32.totalorder %v198, 0
    %vm281 = vcmp.ne.s32.totalorder %v205, 0
    %vm282 = vcmp.ne.s32.totalorder %v212, 0
    %vm283 = vcmp.ne.s32.totalorder %v219, 0
    %vm284 = vcmp.ne.s32.totalorder %v226, 0
    %vm285 = vcmp.ne.s32.totalorder %v233, 0
    %vm286 = vcmp.ne.s32.totalorder %v240, 0
    %vm287 = vcmp.ne.s32.totalorder %v247, 0
    %vm288 = vcmp.ne.s32.totalorder %v254, 0
    %vm289 = vcmp.ne.s32.totalorder %v261, 0
    %vm290 = vcmp.ne.s32.totalorder %v268, 0
    %vm291 = vcmp.ne.s32.totalorder %v275, 0
    %vm292 = vcmp.lt.s32.totalorder %v170, 0
    %vm293 = vcmp.lt.s32.totalorder %v177, 0
    %vm294 = vcmp.lt.s32.totalorder %v184, 0
    %vm295 = vcmp.lt.s32.totalorder %v191, 0
    %vm296 = vcmp.lt.s32.totalorder %v198, 0
    %vm297 = vcmp.lt.s32.totalorder %v205, 0
    %vm298 = vcmp.lt.s32.totalorder %v212, 0
    %vm299 = vcmp.lt.s32.totalorder %v219, 0
    %vm300 = vcmp.lt.s32.totalorder %v226, 0
    %vm301 = vcmp.lt.s32.totalorder %v233, 0
    %vm302 = vcmp.lt.s32.totalorder %v240, 0
    %vm303 = vcmp.lt.s32.totalorder %v247, 0
    %vm304 = vcmp.lt.s32.totalorder %v254, 0
    %vm305 = vcmp.lt.s32.totalorder %v261, 0
    %vm306 = vcmp.lt.s32.totalorder %v268, 0
    %vm307 = vcmp.lt.s32.totalorder %v275, 0
    %vm308 = vmand %vm292, %vm276
    %vm309 = vmand %vm293, %vm277
    %vm310 = vmand %vm294, %vm278
    %vm311 = vmand %vm295, %vm279
    %vm312 = vmand %vm296, %vm280
    %vm313 = vmand %vm297, %vm281
    %vm314 = vmand %vm298, %vm282
    %vm315 = vmand %vm299, %vm283
    %vm316 = vmand %vm300, %vm284
    %vm317 = vmand %vm301, %vm285
    %vm318 = vmand %vm302, %vm286
    %vm319 = vmand %vm303, %vm287
    %vm320 = vmand %vm304, %vm288
    %vm321 = vmand %vm305, %vm289
    %vm322 = vmand %vm306, %vm290
    %vm323 = vmand %vm307, %vm291
    %v324 = vadd.s32 %v170, 4
    %v325 = vadd.s32 %v177, 4
    %v326 = vadd.s32 %v184, 4
    %v327 = vadd.s32 %v191, 4
    %v328 = vadd.s32 %v198, 4
    %v329 = vadd.s32 %v205, 4
    %v330 = vadd.s32 %v212, 4
    %v331 = vadd.s32 %v219, 4
    %v332 = vadd.s32 %v226, 4
    %v333 = vadd.s32 %v233, 4
    %v334 = vadd.s32 %v240, 4
    %v335 = vadd.s32 %v247, 4
    %v336 = vadd.s32 %v254, 4
    %v337 = vadd.s32 %v261, 4
    %v338 = vadd.s32 %v268, 4
    %v339 = vadd.s32 %v275, 4
    %v340 = vsel %vm308, %v324, %v170
    %v341 = vsel %vm309, %v325, %v177
    %v342 = vsel %vm310, %v326, %v184
    %v343 = vsel %vm311, %v327, %v191
    %v344 = vsel %vm312, %v328, %v198
    %v345 = vsel %vm313, %v329, %v205
    %v346 = vsel %vm314, %v330, %v212
    %v347 = vsel %vm315, %v331, %v219
    %v348 = vsel %vm316, %v332, %v226
    %v349 = vsel %vm317, %v333, %v233
    %v350 = vsel %vm318, %v334, %v240
    %v351 = vsel %vm319, %v335, %v247
    %v352 = vsel %vm320, %v336, %v254
    %v353 = vsel %vm321, %v337, %v261
    %v354 = vsel %vm322, %v338, %v268
    %v355 = vsel %vm323, %v339, %v275
    %vm356 = vcmp.lt.s32.totalorder %v340, 1
    %vm357 = vcmp.lt.s32.totalorder %v341, 1
    %vm358 = vcmp.lt.s32.totalorder %v342, 1
    %vm359 = vcmp.lt.s32.totalorder %v343, 1
    %vm360 = vcmp.lt.s32.totalorder %v344, 1
    %vm361 = vcmp.lt.s32.totalorder %v345, 1
    %vm362 = vcmp.lt.s32.totalorder %v346, 1
    %vm363 = vcmp.lt.s32.totalorder %v347, 1
    %vm364 = vcmp.lt.s32.totalorder %v348, 1
    %vm365 = vcmp.lt.s32.totalorder %v349, 1
    %vm366 = vcmp.lt.s32.totalorder %v350, 1
    %vm367 = vcmp.lt.s32.totalorder %v351, 1
    %vm368 = vcmp.lt.s32.totalorder %v352, 1
    %vm369 = vcmp.lt.s32.totalorder %v353, 1
    %vm370 = vcmp.lt.s32.totalorder %v354, 1
    %vm371 = vcmp.lt.s32.totalorder %v355, 1
    %v372 = vsel %vm356, %v100, %v96
    %v373 = vsel %vm357, %v102, %v52
    %v374 = vsel %vm358, %v104, %v54
    %v375 = vsel %vm359, %v106, %v56
    %v376 = vsel %vm360, %v108, %v58
    %v377 = vsel %vm361, %v110, %v60
    %v378 = vsel %vm362, %v112, %v62
    %v379 = vsel %vm363, %v114, %v64
    %v380 = vsel %vm364, %v116, %v66
    %v381 = vsel %vm365, %v118, %v68
    %v382 = vsel %vm366, %v120, %v70
    %v383 = vsel %vm367, %v122, %v72
    %v384 = vsel %vm368, %v124, %v74
    %v385 = vsel %vm369, %v126, %v76
    %v386 = vsel %vm370, %v128, %v78
    %v387 = vsel %vm371, %v146, %v79
    %404 = vrot.lane.b32.xlu0 %v372, 32
    %v405 = vpop.permute.xlu0 %404
    %406 = vrot.lane.b32.xlu0 %v373, 32
    %v407 = vpop.permute.xlu0 %406
    %408 = vrot.lane.b32.xlu0 %v374, 32
    %v409 = vpop.permute.xlu0 %408
    %410 = vrot.lane.b32.xlu0 %v375, 32
    %v411 = vpop.permute.xlu0 %410
    %412 = vrot.lane.b32.xlu0 %v376, 32
    %v413 = vpop.permute.xlu0 %412
    %414 = vrot.lane.b32.xlu0 %v377, 32
    %v415 = vpop.permute.xlu0 %414
    %416 = vrot.lane.b32.xlu0 %v378, 32
    %v417 = vpop.permute.xlu0 %416
    %418 = vrot.lane.b32.xlu0 %v379, 32
    %v419 = vpop.permute.xlu0 %418
    %420 = vrot.lane.b32.xlu0 %v380, 32
    %v421 = vpop.permute.xlu0 %420
    %422 = vrot.lane.b32.xlu0 %v381, 32
    %v423 = vpop.permute.xlu0 %422
    %424 = vrot.lane.b32.xlu0 %v382, 32
    %v425 = vpop.permute.xlu0 %424
    %426 = vrot.lane.b32.xlu0 %v383, 32
    %v427 = vpop.permute.xlu0 %426
    %428 = vrot.lane.b32.xlu0 %v384, 32
    %v429 = vpop.permute.xlu0 %428
    %430 = vrot.lane.b32.xlu0 %v385, 32
    %v431 = vpop.permute.xlu0 %430
    %432 = vrot.lane.b32.xlu0 %v386, 32
    %v433 = vpop.permute.xlu0 %432
    %434 = vrot.lane.b32.xlu0 %v387, 32
    %v435 = vpop.permute.xlu0 %434
    %vm452 = vcmask 261120
    %v453 = vsel %vm452, %v15, %v405
    %v454 = vsel %vm452, %v16, %v407
    %v455 = vsel %vm452, %v17, %v409
    %v456 = vsel %vm452, %v18, %v411
    %v457 = vsel %vm452, %v19, %v413
    %v458 = vsel %vm452, %v20, %v415
    %v459 = vsel %vm452, %v21, %v417
    %v460 = vsel %vm452, %v22, %v419
    %v461 = vsel %vm452, %v23, %v421
    %v462 = vsel %vm452, %v24, %v423
    %v463 = vsel %vm452, %v25, %v425
    %v464 = vsel %vm452, %v26, %v427
    %v465 = vsel %vm452, %v27, %v429
    %v466 = vsel %vm452, %v28, %v431
    %v467 = vsel %vm452, %v29, %v433
    %v468 = vsel %vm452, %v30, %v435
    %v469 = vld [vmem:[%s1] sm:$0xff]
    %v470 = vld [vmem:[%s1 + $0x8] sm:$0xff]
    %v471 = vld [vmem:[%s1 + $0x10] sm:$0xff]
    %v472 = vld [vmem:[%s1 + $0x18] sm:$0xff]
    %v473 = vld [vmem:[%s1 + $0x20] sm:$0xff]
    %v474 = vld [vmem:[%s1 + $0x28] sm:$0xff]
    %v475 = vld [vmem:[%s1 + $0x30] sm:$0xff]
    %v476 = vld [vmem:[%s1 + $0x38] sm:$0xff]
    %v477 = vld [vmem:[%s2] sm:$0x1]
    %v478 = vlaneseq
    %v479 = vshrl.u32 %v478, 7
    %v480 = vsub.s32 0, %v479
    %v481 = vrot.slane %v477, %v480
    %vm482 = vcmask 523264
    %v484 = vsel %vm482, %v453, 0
    %v487 = vsel %vm482, %v454, 0
    %v490 = vsel %vm482, %v455, 0
    %v493 = vsel %vm482, %v456, 0
    %v496 = vsel %vm482, %v457, 0
    %v499 = vsel %vm482, %v458, 0
    %v502 = vsel %vm482, %v459, 0
    %v505 = vsel %vm482, %v460, 0
    %v508 = vsel %vm482, %v461, 0
    %v511 = vsel %vm482, %v462, 0
    %v514 = vsel %vm482, %v463, 0
    %v517 = vsel %vm482, %v464, 0
    %v520 = vsel %vm482, %v465, 0
    %v523 = vsel %vm482, %v466, 0
    %v526 = vsel %vm482, %v467, 0
    %v529 = vsel %vm482, %v468, 0
    %531 = vmatprep.subr.mxu0 0.0
    %532 = vmatpush1.msra.mxu0 %v469
    %533 = vmatprep.subr.mxu0 0.0
    %534 = vmatpush1.msra.mxu0 %v470
    %535 = vmatprep.subr.mxu0 0.0
    %536 = vmatpush1.msra.mxu0 %v471
    %537 = vmatprep.subr.mxu0 0.0
    %538 = vmatpush1.msra.mxu0 %v472
    %539 = vmatprep.subr.mxu0 0.0
    %540 = vmatpush1.msra.mxu0 %v473
    %541 = vmatprep.subr.mxu0 0.0
    %542 = vmatpush1.msra.mxu0 %v474
    %543 = vmatprep.subr.mxu0 0.0
    %544 = vmatpush1.msra.mxu0 %v475
    %545 = vmatprep.subr.mxu0 0.0
    %546 = vmatpush1.msra.mxu0 %v476
    %547 = vmatprep.subr.mxu0 0.0
    %548 = vmatpush1.msra.mxu0 0.0
    %549 = vmatprep.subr.mxu0 0.0
    %550 = vmatpush1.msra.mxu0 0.0
    %551 = vmatprep.subr.mxu0 0.0
    %552 = vmatpush1.msra.mxu0 0.0
    %553 = vmatprep.subr.mxu0 0.0
    %554 = vmatpush1.msra.mxu0 0.0
    %555 = vmatprep.subr.mxu0 0.0
    %556 = vmatpush1.msra.mxu0 0.0
    %557 = vmatprep.subr.mxu0 0.0
    %558 = vmatpush1.msra.mxu0 0.0
    %559 = vmatprep.subr.mxu0 0.0
    %560 = vmatpush1.msra.mxu0 0.0
    %561 = vmatprep.subr.mxu0 0.0
    %562 = vmatpush1.msra.mxu0 0.0
    %563 = vmatprep.subr.mxu0 0.0
    %564 = vmatpush1.msra.mxu0 0.0
    %565 = vmatprep.subr.mxu0 0.0
    %566 = vmatpush1.msra.mxu0 0.0
    %567 = vmatprep.subr.mxu0 0.0
    %568 = vmatpush1.msra.mxu0 0.0
    %569 = vmatprep.subr.mxu0 0.0
    %570 = vmatpush1.msra.mxu0 0.0
    %571 = vmatprep.subr.mxu0 0.0
    %572 = vmatpush1.msra.mxu0 0.0
    %573 = vmatprep.subr.mxu0 0.0
    %574 = vmatpush1.msra.mxu0 0.0
    %575 = vmatprep.subr.mxu0 0.0
    %576 = vmatpush1.msra.mxu0 0.0
    %577 = vmatprep.subr.mxu0 0.0
    %578 = vmatpush1.msra.mxu0 0.0
    %579 = vmatprep.subr.mxu0 0.0
    %580 = vmatpush1.msra.mxu0 0.0
    %581 = vmatprep.subr.mxu0 0.0
    %582 = vmatpush1.msra.mxu0 0.0
    %583 = vmatprep.subr.mxu0 0.0
    %584 = vmatpush1.msra.mxu0 0.0
    %585 = vmatprep.subr.mxu0 0.0
    %586 = vmatpush1.msra.mxu0 0.0
    %587 = vmatprep.subr.mxu0 0.0
    %588 = vmatpush1.msra.mxu0 0.0
    %589 = vmatprep.subr.mxu0 0.0
    %590 = vmatpush1.msra.mxu0 0.0
    %591 = vmatprep.subr.mxu0 0.0
    %592 = vmatpush1.msra.mxu0 0.0
    %593 = vmatprep.subr.mxu0 0.0
    %594 = vmatpush1.msra.mxu0 0.0
    %595 = vmatprep.mubr.f32.mxu0 0.0
    %596 = vmatmul.mubr.f32.gmra.mrb[0].mxu0 %v484
    %v597 = vpop.f32.mrb[0].mxu0
    %v598 = vadd.f32 %v481, %v597
    %v599 = vpop.f32.mrb[0].mxu0
    %600 = vmatprep.mubr.f32.mxu0 0.0
    %601 = vmatmul.mubr.f32.gmra.mrb[0].mxu0 %v487
    %v602 = vpop.f32.mrb[0].mxu0
    %v603 = vadd.f32 %v481, %v602
    %v604 = vpop.f32.mrb[0].mxu0
    %605 = vmatprep.mubr.f32.mxu0 0.0
    %606 = vmatmul.mubr.f32.gmra.mrb[0].mxu0 %v490
    %v607 = vpop.f32.mrb[0].mxu0
    %v608 = vadd.f32 %v481, %v607
    %v609 = vpop.f32.mrb[0].mxu0
    %610 = vmatprep.mubr.f32.mxu0 0.0
    %611 = vmatmul.mubr.f32.gmra.mrb[0].mxu0 %v493
    %v612 = vpop.f32.mrb[0].mxu0
    %v613 = vadd.f32 %v481, %v612
    %v614 = vpop.f32.mrb[0].mxu0
    %615 = vmatprep.mubr.f32.mxu0 0.0
    %616 = vmatmul.mubr.f32.gmra.mrb[0].mxu0 %v496
    %v617 = vpop.f32.mrb[0].mxu0
    %v618 = vadd.f32 %v481, %v617
    %v619 = vpop.f32.mrb[0].mxu0
    %620 = vmatprep.mubr.f32.mxu0 0.0
    %621 = vmatmul.mubr.f32.gmra.mrb[0].mxu0 %v499
    %v622 = vpop.f32.mrb[0].mxu0
    %v623 = vadd.f32 %v481, %v622
    %v624 = vpop.f32.mrb[0].mxu0
    %625 = vmatprep.mubr.f32.mxu0 0.0
    %626 = vmatmul.mubr.f32.gmra.mrb[0].mxu0 %v502
    %v627 = vpop.f32.mrb[0].mxu0
    %v628 = vadd.f32 %v481, %v627
    %v629 = vpop.f32.mrb[0].mxu0
    %630 = vmatprep.mubr.f32.mxu0 0.0
    %631 = vmatmul.mubr.f32.gmra.mrb[0].mxu0 %v505
    %v632 = vpop.f32.mrb[0].mxu0
    %v633 = vadd.f32 %v481, %v632
    %v634 = vpop.f32.mrb[0].mxu0
    %635 = vmatprep.mubr.f32.mxu0 0.0
    %636 = vmatmul.mubr.f32.gmra.mrb[0].mxu0 %v508
    %v637 = vpop.f32.mrb[0].mxu0
    %v638 = vadd.f32 %v481, %v637
    %v639 = vpop.f32.mrb[0].mxu0
    %640 = vmatprep.mubr.f32.mxu0 0.0
    %641 = vmatmul.mubr.f32.gmra.mrb[0].mxu0 %v511
    %v642 = vpop.f32.mrb[0].mxu0
    %v643 = vadd.f32 %v481, %v642
    %v644 = vpop.f32.mrb[0].mxu0
    %645 = vmatprep.mubr.f32.mxu0 0.0
    %646 = vmatmul.mubr.f32.gmra.mrb[0].mxu0 %v514
    %v647 = vpop.f32.mrb[0].mxu0
    %v648 = vadd.f32 %v481, %v647
    %v649 = vpop.f32.mrb[0].mxu0
    %650 = vmatprep.mubr.f32.mxu0 0.0
    %651 = vmatmul.mubr.f32.gmra.mrb[0].mxu0 %v517
    %v652 = vpop.f32.mrb[0].mxu0
    %v653 = vadd.f32 %v481, %v652
    %v654 = vpop.f32.mrb[0].mxu0
    %655 = vmatprep.mubr.f32.mxu0 0.0
    %656 = vmatmul.mubr.f32.gmra.mrb[0].mxu0 %v520
    %v657 = vpop.f32.mrb[0].mxu0
    %v658 = vadd.f32 %v481, %v657
    %v659 = vpop.f32.mrb[0].mxu0
    %660 = vmatprep.mubr.f32.mxu0 0.0
    %661 = vmatmul.mubr.f32.gmra.mrb[0].mxu0 %v523
    %v662 = vpop.f32.mrb[0].mxu0
    %v663 = vadd.f32 %v481, %v662
    %v664 = vpop.f32.mrb[0].mxu0
    %665 = vmatprep.mubr.f32.mxu0 0.0
    %666 = vmatmul.mubr.f32.gmra.mrb[0].mxu0 %v526
    %v667 = vpop.f32.mrb[0].mxu0
    %v668 = vadd.f32 %v481, %v667
    %v669 = vpop.f32.mrb[0].mxu0
    %670 = vmatprep.mubr.f32.mxu0 0.0
    %671 = vmatmul.mubr.f32.gmra.mrb[0].mxu0 %v529
    %v672 = vpop.f32.mrb[0].mxu0
    %v673 = vadd.f32 %v481, %v672
    %v674 = vpop.f32.mrb[0].mxu0
    %675 = vdwg.mxu0
    %v676 = vmax.f32 %v598, 0.0
    %v677 = vmax.f32 %v603, 0.0
    %v678 = vmax.f32 %v608, 0.0
    %v679 = vmax.f32 %v613, 0.0
    %v680 = vmax.f32 %v618, 0.0
    %v681 = vmax.f32 %v623, 0.0
    %v682 = vmax.f32 %v628, 0.0
    %v683 = vmax.f32 %v633, 0.0
    %v684 = vmax.f32 %v638, 0.0
    %v685 = vmax.f32 %v643, 0.0
    %v686 = vmax.f32 %v648, 0.0
    %v687 = vmax.f32 %v653, 0.0
    %v688 = vmax.f32 %v658, 0.0
    %v689 = vmax.f32 %v663, 0.0
    %v690 = vmax.f32 %v668, 0.0
    %v691 = vmax.f32 %v673, 0.0
    %v692 = vsel %vm452, %v676, 0.0
    %693 = vadd.xlane.f32.xlu0 %v692
    %v694 = vpop.xlane.xlu0 %693
    %v695 = vsel %vm452, %v677, 0.0
    %696 = vadd.xlane.f32.xlu0 %v695
    %v697 = vpop.xlane.xlu0 %696
    %v698 = vsel %vm452, %v678, 0.0
    %699 = vadd.xlane.f32.xlu0 %v698
    %v700 = vpop.xlane.xlu0 %699
    %v701 = vsel %vm452, %v679, 0.0
    %702 = vadd.xlane.f32.xlu0 %v701
    %v703 = vpop.xlane.xlu0 %702
    %v704 = vsel %vm452, %v680, 0.0
    %705 = vadd.xlane.f32.xlu0 %v704
    %v706 = vpop.xlane.xlu0 %705
    %v707 = vsel %vm452, %v681, 0.0
    %708 = vadd.xlane.f32.xlu0 %v707
    %v709 = vpop.xlane.xlu0 %708
    %v710 = vsel %vm452, %v682, 0.0
    %711 = vadd.xlane.f32.xlu0 %v710
    %v712 = vpop.xlane.xlu0 %711
    %v713 = vsel %vm452, %v683, 0.0
    %714 = vadd.xlane.f32.xlu0 %v713
    %v715 = vpop.xlane.xlu0 %714
    %v716 = vsel %vm452, %v684, 0.0
    %717 = vadd.xlane.f32.xlu0 %v716
    %v718 = vpop.xlane.xlu0 %717
    %v719 = vsel %vm452, %v685, 0.0
    %720 = vadd.xlane.f32.xlu0 %v719
    %v721 = vpop.xlane.xlu0 %720
    %v722 = vsel %vm452, %v686, 0.0
    %723 = vadd.xlane.f32.xlu0 %v722
    %v724 = vpop.xlane.xlu0 %723
    %v725 = vsel %vm452, %v687, 0.0
    %726 = vadd.xlane.f32.xlu0 %v725
    %v727 = vpop.xlane.xlu0 %726
    %v728 = vsel %vm452, %v688, 0.0
    %729 = vadd.xlane.f32.xlu0 %v728
    %v730 = vpop.xlane.xlu0 %729
    %v731 = vsel %vm452, %v689, 0.0
    %732 = vadd.xlane.f32.xlu0 %v731
    %v733 = vpop.xlane.xlu0 %732
    %v734 = vsel %vm452, %v690, 0.0
    %735 = vadd.xlane.f32.xlu0 %v734
    %v736 = vpop.xlane.xlu0 %735
    %v737 = vsel %vm452, %v691, 0.0
    %738 = vadd.xlane.f32.xlu0 %v737
    %v739 = vpop.xlane.xlu0 %738
    %v740 = vmul.f32 %v694, 0.03125
    %v741 = vmul.f32 %v697, 0.03125
    %v742 = vmul.f32 %v700, 0.03125
    %v743 = vmul.f32 %v703, 0.03125
    %v744 = vmul.f32 %v706, 0.03125
    %v745 = vmul.f32 %v709, 0.03125
    %v746 = vmul.f32 %v712, 0.03125
    %v747 = vmul.f32 %v715, 0.03125
    %v748 = vmul.f32 %v718, 0.03125
    %v749 = vmul.f32 %v721, 0.03125
    %v750 = vmul.f32 %v724, 0.03125
    %v751 = vmul.f32 %v727, 0.03125
    %v752 = vmul.f32 %v730, 0.03125
    %v753 = vmul.f32 %v733, 0.03125
    %v754 = vmul.f32 %v736, 0.03125
    %v755 = vmul.f32 %v739, 0.03125
    %v756 = vmul.f32 %v676, %v676
    %v757 = vmul.f32 %v677, %v677
    %v758 = vmul.f32 %v678, %v678
    %v759 = vmul.f32 %v679, %v679
    %v760 = vmul.f32 %v680, %v680
    %v761 = vmul.f32 %v681, %v681
    %v762 = vmul.f32 %v682, %v682
    %v763 = vmul.f32 %v683, %v683
    %v764 = vmul.f32 %v684, %v684
    %v765 = vmul.f32 %v685, %v685
    %v766 = vmul.f32 %v686, %v686
    %v767 = vmul.f32 %v687, %v687
    %v768 = vmul.f32 %v688, %v688
    %v769 = vmul.f32 %v689, %v689
    %v770 = vmul.f32 %v690, %v690
    %v771 = vmul.f32 %v691, %v691
    %v772 = vsel %vm452, %v756, 0.0
    %773 = vadd.xlane.f32.xlu0 %v772
    %v774 = vpop.xlane.xlu0 %773
    %v775 = vsel %vm452, %v757, 0.0
    %776 = vadd.xlane.f32.xlu0 %v775
    %v777 = vpop.xlane.xlu0 %776
    %v778 = vsel %vm452, %v758, 0.0
    %779 = vadd.xlane.f32.xlu0 %v778
    %v780 = vpop.xlane.xlu0 %779
    %v781 = vsel %vm452, %v759, 0.0
    %782 = vadd.xlane.f32.xlu0 %v781
    %v783 = vpop.xlane.xlu0 %782
    %v784 = vsel %vm452, %v760, 0.0
    %785 = vadd.xlane.f32.xlu0 %v784
    %v786 = vpop.xlane.xlu0 %785
    %v787 = vsel %vm452, %v761, 0.0
    %788 = vadd.xlane.f32.xlu0 %v787
    %v789 = vpop.xlane.xlu0 %788
    %v790 = vsel %vm452, %v762, 0.0
    %791 = vadd.xlane.f32.xlu0 %v790
    %v792 = vpop.xlane.xlu0 %791
    %v793 = vsel %vm452, %v763, 0.0
    %794 = vadd.xlane.f32.xlu0 %v793
    %v795 = vpop.xlane.xlu0 %794
    %v796 = vsel %vm452, %v764, 0.0
    %797 = vadd.xlane.f32.xlu0 %v796
    %v798 = vpop.xlane.xlu0 %797
    %v799 = vsel %vm452, %v765, 0.0
    %800 = vadd.xlane.f32.xlu0 %v799
    %v801 = vpop.xlane.xlu0 %800
    %v802 = vsel %vm452, %v766, 0.0
    %803 = vadd.xlane.f32.xlu0 %v802
    %v804 = vpop.xlane.xlu0 %803
    %v805 = vsel %vm452, %v767, 0.0
    %806 = vadd.xlane.f32.xlu0 %v805
    %v807 = vpop.xlane.xlu0 %806
    %v808 = vsel %vm452, %v768, 0.0
    %809 = vadd.xlane.f32.xlu0 %v808
    %v810 = vpop.xlane.xlu0 %809
    %v811 = vsel %vm452, %v769, 0.0
    %812 = vadd.xlane.f32.xlu0 %v811
    %v813 = vpop.xlane.xlu0 %812
    %v814 = vsel %vm452, %v770, 0.0
    %815 = vadd.xlane.f32.xlu0 %v814
    %v816 = vpop.xlane.xlu0 %815
    %v817 = vsel %vm452, %v771, 0.0
    %818 = vadd.xlane.f32.xlu0 %v817
    %v819 = vpop.xlane.xlu0 %818
    %v820 = vmul.f32 %v774, 0.03125
    %v821 = vmul.f32 %v777, 0.03125
    %v822 = vmul.f32 %v780, 0.03125
    %v823 = vmul.f32 %v783, 0.03125
    %v824 = vmul.f32 %v786, 0.03125
    %v825 = vmul.f32 %v789, 0.03125
    %v826 = vmul.f32 %v792, 0.03125
    %v827 = vmul.f32 %v795, 0.03125
    %v828 = vmul.f32 %v798, 0.03125
    %v829 = vmul.f32 %v801, 0.03125
    %v830 = vmul.f32 %v804, 0.03125
    %v831 = vmul.f32 %v807, 0.03125
    %v832 = vmul.f32 %v810, 0.03125
    %v833 = vmul.f32 %v813, 0.03125
    %v834 = vmul.f32 %v816, 0.03125
    %v835 = vmul.f32 %v819, 0.03125
    %v836 = vmul.f32 %v740, %v740
    %v837 = vmul.f32 %v741, %v741
    %v838 = vmul.f32 %v742, %v742
    %v839 = vmul.f32 %v743, %v743
    %v840 = vmul.f32 %v744, %v744
    %v841 = vmul.f32 %v745, %v745
    %v842 = vmul.f32 %v746, %v746
    %v843 = vmul.f32 %v747, %v747
    %v844 = vmul.f32 %v748, %v748
    %v845 = vmul.f32 %v749, %v749
    %v846 = vmul.f32 %v750, %v750
    %v847 = vmul.f32 %v751, %v751
    %v848 = vmul.f32 %v752, %v752
    %v849 = vmul.f32 %v753, %v753
    %v850 = vmul.f32 %v754, %v754
    %v851 = vmul.f32 %v755, %v755
    %v852 = vsub.f32 %v820, %v836
    %v853 = vsub.f32 %v821, %v837
    %v854 = vsub.f32 %v822, %v838
    %v855 = vsub.f32 %v823, %v839
    %v856 = vsub.f32 %v824, %v840
    %v857 = vsub.f32 %v825, %v841
    %v858 = vsub.f32 %v826, %v842
    %v859 = vsub.f32 %v827, %v843
    %v860 = vsub.f32 %v828, %v844
    %v861 = vsub.f32 %v829, %v845
    %v862 = vsub.f32 %v830, %v846
    %v863 = vsub.f32 %v831, %v847
    %v864 = vsub.f32 %v832, %v848
    %v865 = vsub.f32 %v833, %v849
    %v866 = vsub.f32 %v834, %v850
    %v867 = vsub.f32 %v835, %v851
    %v868 = vmax.f32 %v852, 0.0
    %v869 = vmax.f32 %v853, 0.0
    %v870 = vmax.f32 %v854, 0.0
    %v871 = vmax.f32 %v855, 0.0
    %v872 = vmax.f32 %v856, 0.0
    %v873 = vmax.f32 %v857, 0.0
    %v874 = vmax.f32 %v858, 0.0
    %v875 = vmax.f32 %v859, 0.0
    %v876 = vmax.f32 %v860, 0.0
    %v877 = vmax.f32 %v861, 0.0
    %v878 = vmax.f32 %v862, 0.0
    %v879 = vmax.f32 %v863, 0.0
    %v880 = vmax.f32 %v864, 0.0
    %v881 = vmax.f32 %v865, 0.0
    %v882 = vmax.f32 %v866, 0.0
    %v883 = vmax.f32 %v867, 0.0
    %v884 = vsub.f32 %v676, %v740
    %v885 = vsub.f32 %v677, %v741
    %v886 = vsub.f32 %v678, %v742
    %v887 = vsub.f32 %v679, %v743
    %v888 = vsub.f32 %v680, %v744
    %v889 = vsub.f32 %v681, %v745
    %v890 = vsub.f32 %v682, %v746
    %v891 = vsub.f32 %v683, %v747
    %v892 = vsub.f32 %v684, %v748
    %v893 = vsub.f32 %v685, %v749
    %v894 = vsub.f32 %v686, %v750
    %v895 = vsub.f32 %v687, %v751
    %v896 = vsub.f32 %v688, %v752
    %v897 = vsub.f32 %v689, %v753
    %v898 = vsub.f32 %v690, %v754
    %v899 = vsub.f32 %v691, %v755
    %v900 = vadd.f32 %v868, 1e-05
    %v901 = vadd.f32 %v869, 1e-05
    %v902 = vadd.f32 %v870, 1e-05
    %v903 = vadd.f32 %v871, 1e-05
    %v904 = vadd.f32 %v872, 1e-05
    %v905 = vadd.f32 %v873, 1e-05
    %v906 = vadd.f32 %v874, 1e-05
    %v907 = vadd.f32 %v875, 1e-05
    %v908 = vadd.f32 %v876, 1e-05
    %v909 = vadd.f32 %v877, 1e-05
    %v910 = vadd.f32 %v878, 1e-05
    %v911 = vadd.f32 %v879, 1e-05
    %v912 = vadd.f32 %v880, 1e-05
    %v913 = vadd.f32 %v881, 1e-05
    %v914 = vadd.f32 %v882, 1e-05
    %v915 = vadd.f32 %v883, 1e-05
    %v916 = vrsqrt.pop %v900
    %v917 = vrsqrt.pop %v901
    %v918 = vrsqrt.pop %v902
    %v919 = vrsqrt.pop %v903
    %v920 = vrsqrt.pop %v904
    %v921 = vrsqrt.pop %v905
    %v922 = vrsqrt.pop %v906
    %v923 = vrsqrt.pop %v907
    %v924 = vrsqrt.pop %v908
    %v925 = vrsqrt.pop %v909
    %v926 = vrsqrt.pop %v910
    %v927 = vrsqrt.pop %v911
    %v928 = vrsqrt.pop %v912
    %v929 = vrsqrt.pop %v913
    %v930 = vrsqrt.pop %v914
    %v931 = vrsqrt.pop %v915
    %v932 = vmul.f32 %v884, %v916
    %v933 = vmul.f32 %v885, %v917
    %v934 = vmul.f32 %v886, %v918
    %v935 = vmul.f32 %v887, %v919
    %v936 = vmul.f32 %v888, %v920
    %v937 = vmul.f32 %v889, %v921
    %v938 = vmul.f32 %v890, %v922
    %v939 = vmul.f32 %v891, %v923
    %v940 = vmul.f32 %v892, %v924
    %v941 = vmul.f32 %v893, %v925
    %v942 = vmul.f32 %v894, %v926
    %v943 = vmul.f32 %v895, %v927
    %v944 = vmul.f32 %v896, %v928
    %v945 = vmul.f32 %v897, %v929
    %v946 = vmul.f32 %v898, %v930
    %v947 = vmul.f32 %v899, %v931
    %v948 = vld [vmem:[%s2 + $0x1] sm:$0x1]
    %v949 = vlaneseq
    %v950 = vshrl.u32 %v949, 7
    %v951 = vsub.s32 0, %v950
    %v952 = vrot.slane %v948, %v951
    %v953 = vmul.f32 %v932, %v952
    %v954 = vmul.f32 %v933, %v952
    %v955 = vmul.f32 %v934, %v952
    %v956 = vmul.f32 %v935, %v952
    %v957 = vmul.f32 %v936, %v952
    %v958 = vmul.f32 %v937, %v952
    %v959 = vmul.f32 %v938, %v952
    %v960 = vmul.f32 %v939, %v952
    %v961 = vmul.f32 %v940, %v952
    %v962 = vmul.f32 %v941, %v952
    %v963 = vmul.f32 %v942, %v952
    %v964 = vmul.f32 %v943, %v952
    %v965 = vmul.f32 %v944, %v952
    %v966 = vmul.f32 %v945, %v952
    %v967 = vmul.f32 %v946, %v952
    %v968 = vmul.f32 %v947, %v952
    %v969 = vld [vmem:[%s2 + $0x2] sm:$0x1]
    %v970 = vlaneseq
    %v971 = vshrl.u32 %v970, 7
    %v972 = vsub.s32 0, %v971
    %v973 = vrot.slane %v969, %v972
    %v974 = vadd.f32 %v953, %v973
    %v975 = vadd.f32 %v954, %v973
    %v976 = vadd.f32 %v955, %v973
    %v977 = vadd.f32 %v956, %v973
    %v978 = vadd.f32 %v957, %v973
    %v979 = vadd.f32 %v958, %v973
    %v980 = vadd.f32 %v959, %v973
    %v981 = vadd.f32 %v960, %v973
    %v982 = vadd.f32 %v961, %v973
    %v983 = vadd.f32 %v962, %v973
    %v984 = vadd.f32 %v963, %v973
    %v985 = vadd.f32 %v964, %v973
    %v986 = vadd.f32 %v965, %v973
    %v987 = vadd.f32 %v966, %v973
    %v988 = vadd.f32 %v967, %v973
    %v989 = vadd.f32 %v968, %v973
    %990 = vst.msk [vmem:[#allocation2] sm:$0xff] %vm452, %v974
    %991 = vst.msk [vmem:[#allocation2 + $0x8] sm:$0xff] %vm452, %v975
    %992 = vst.msk [vmem:[#allocation2 + $0x10] sm:$0xff] %vm452, %v976
    %993 = vst.msk [vmem:[#allocation2 + $0x18] sm:$0xff] %vm452, %v977
    %994 = vst.msk [vmem:[#allocation2 + $0x20] sm:$0xff] %vm452, %v978
    %995 = vst.msk [vmem:[#allocation2 + $0x28] sm:$0xff] %vm452, %v979
    %996 = vst.msk [vmem:[#allocation2 + $0x30] sm:$0xff] %vm452, %v980
    %997 = vst.msk [vmem:[#allocation2 + $0x38] sm:$0xff] %vm452, %v981
    %998 = vst.msk [vmem:[#allocation2 + $0x40] sm:$0xff] %vm452, %v982
    %999 = vst.msk [vmem:[#allocation2 + $0x48] sm:$0xff] %vm452, %v983
    %1000 = vst.msk [vmem:[#allocation2 + $0x50] sm:$0xff] %vm452, %v984
    %1001 = vst.msk [vmem:[#allocation2 + $0x58] sm:$0xff] %vm452, %v985
    %1002 = vst.msk [vmem:[#allocation2 + $0x60] sm:$0xff] %vm452, %v986
    %1003 = vst.msk [vmem:[#allocation2 + $0x68] sm:$0xff] %vm452, %v987
    %1004 = vst.msk [vmem:[#allocation2 + $0x70] sm:$0xff] %vm452, %v988
    %1005 = vst.msk [vmem:[#allocation2 + $0x78] sm:$0xff] %vm452, %v989
    // Predicated region
    $region14: #{message_passing_inter.1} parent=1 // pred_check
      _
    $region15: #{message_passing_inter.1} parent=1 // pred_check_branch
      %1007 = sbr.rel (0) target = $region17
    $region16: #{message_passing_inter.1} parent=1 // pred_region
      %s1009 = ssub.s32 2048, 2048
      %1010 = vsyncadd [#allocation3], %s1009
      %s1011 = sshll.u32 [#allocation2], 4
      %s1012 = int_to_ptr.vmem [resolvable:$true] %s1011
      %1017 = dma.vmem_to_hbm [thread:$0]  %s1012, 2048, %s3, [#allocation3], 128, 128, 8
    $region17: #{message_passing_inter.1} parent=1 // pred_fallthru
      _
    // Predicated region
    $region18: #{message_passing_inter.1} parent=1 // pred_check
      _
    $region19: #{message_passing_inter.1} parent=1 // pred_check_branch
      %1019 = sbr.rel (0) target = $region21
    $region20: #{message_passing_inter.1} parent=1 // pred_region
      %1020 = dma.done [#allocation3], 2048
    $region21: #{message_passing_inter.1} parent=1 // pred_fallthru
      _
    %1021 = vsyncpa [#allocation3], 1

</llo_original>
